<compile_context>
chip_gen: v7x
topology: tpu7x:2x2x1
jax: 0.10.0
libtpu: 0.0.40
codegen_flags: <defaults>
</compile_context>

<pallas_src>
import functools

import jax
import jax.numpy as jnp
from jax.experimental import pallas as pl
from jax.experimental.pallas import tpu as pltpu

D_IN = 3
H1, H2, H3 = 120, 100, 80
HP = 128            # lane-padded hidden / output width
TARGET_ROWS = 4096  # target M = tile_b * S_pad rows per grid step


def phi_kernel(x_ref, w1_ref, b1_ref, w2_ref, b2_ref, w3_ref, b3_ref, o_ref,
               *, seq_len, seq_pad):
    tb = x_ref.shape[0]
    x = x_ref[...]                                    # (tb, 3*seq_pad) f32
    w1 = w1_ref[...]                                  # (3, 128) f32

    # ---- Layer 1: K=3 contraction as three VPU broadcast FMAs (skip MXU) ----
    h = (x[:, 0 * seq_pad:1 * seq_pad, None] * w1[0, :]
         + x[:, 1 * seq_pad:2 * seq_pad, None] * w1[1, :]
         + x[:, 2 * seq_pad:3 * seq_pad, None] * w1[2, :]
         + b1_ref[0, :])                              # (tb, seq_pad, 128)
    h = jnp.maximum(h, 0.0)

    # ---- Layers 2 & 3 on the MXU: bf16 operands, f32 accumulation ----
    # seq_pad % 8 == 0, so this reshape is a layout no-op.
    h = h.reshape(tb * seq_pad, HP)
    h = jnp.dot(h.astype(jnp.bfloat16), w2_ref[...],
                preferred_element_type=jnp.float32) + b2_ref[...]
    h = jnp.maximum(h, 0.0)
    h = jnp.dot(h.astype(jnp.bfloat16), w3_ref[...],
                preferred_element_type=jnp.float32) + b3_ref[...]
    h = jnp.maximum(h, 0.0)

    # ---- Sequence reduction: mask padded rows (if any), sum over S ----
    h = h.reshape(tb, seq_pad, HP)
    if seq_pad != seq_len:
        # Zero-padded sequence rows are NOT neutral (bias + ReLU); mask them.
        mask = jax.lax.broadcasted_iota(jnp.int32, (seq_pad, HP), 0) < seq_len
        h = jnp.where(mask[None, :, :], h, 0.0)
    o_ref[...] = jnp.sum(h, axis=1)                   # (tb, 128) lane-dense


def _round_up(v, m):
    return ((v + m - 1) // m) * m


def _cdiv(a, b):
    return (a + b - 1) // b


def _pad_params(params):
    """Zero-pad weights/biases to 128 lanes; bf16 for the MXU layers."""
    w1, b1, w2, b2, w3, b3 = params
    w1p = jnp.zeros((D_IN, HP), jnp.float32).at[:, :H1].set(w1)
    b1p = jnp.zeros((1, HP), jnp.float32).at[:, :H1].set(b1)
    w2p = jnp.zeros((HP, HP), jnp.float32).at[:H1, :H2].set(w2).astype(jnp.bfloat16)
    b2p = jnp.zeros((1, HP), jnp.float32).at[:, :H2].set(b2)
    w3p = jnp.zeros((HP, HP), jnp.float32).at[:H2, :H3].set(w3).astype(jnp.bfloat16)
    b3p = jnp.zeros((1, HP), jnp.float32).at[:, :H3].set(b3)
    return w1p, b1p, w2p, b2p, w3p, b3p


def phi_forward(x, params, *, tile_b=None, slice_output=True):
    """x: (B, S, 3) float32 -> (B, 80) float32 (or (B_pad, 128) if slice_output=False)."""
    B, S, d = x.shape
    assert d == D_IN, f"expected last dim {D_IN}, got {d}"
    S_pad = _round_up(max(S, 1), 8)
    w1p, b1p, w2p, b2p, w3p, b3p = _pad_params(params)

    # Lane-dense, channel-major input layout: (B, 3*S_pad). Each channel is a
    # contiguous lane slice; the HBM->VMEM DMA is one contiguous row/sample.
    xt = jnp.transpose(x, (0, 2, 1))                  # (B, 3, S)
    if S_pad != S:
        xt = jnp.pad(xt, ((0, 0), (0, 0), (0, S_pad - S)))
    xf = xt.reshape(B, D_IN * S_pad)

    if tile_b is None:
        # Aim for ~TARGET_ROWS rows of M per block; tile_b multiple of 8.
        tile_b = max(8, _round_up(min(max(TARGET_ROWS // S_pad, 1), B), 8))
        n_blocks = _cdiv(B, tile_b)
        if n_blocks > 1 and n_blocks % 2 == 1:
            # Prefer an even block count so the "parallel" axis splits evenly
            # across v7x's two TensorCores (moot on v5e/v6e).
            tile_b = max(8, _round_up(_cdiv(B, n_blocks + 1), 8))

    n_blocks = _cdiv(B, tile_b)
    B_pad = n_blocks * tile_b
    if B_pad != B:
        xf = jnp.pad(xf, ((0, B_pad - B), (0, 0)))

    kernel = functools.partial(phi_kernel, seq_len=S, seq_pad=S_pad)
    full = lambda shape: pl.BlockSpec(shape, lambda i: (0,) * len(shape))

    flops = 2 * B_pad * S_pad * (D_IN * HP + 2 * HP * HP)
    bytes_accessed = (B_pad * D_IN * S_pad * 4        # x
                      + B_pad * HP * 4                # out
                      + 4 * D_IN * HP + 2 * 2 * HP * HP   # weights
                      + 3 * 4 * HP)                   # biases

    out = pl.pallas_call(
        kernel,
        out_shape=jax.ShapeDtypeStruct((B_pad, HP), jnp.float32),
        grid_spec=pltpu.PrefetchScalarGridSpec(
            num_scalar_prefetch=0,
            grid=(n_blocks,),
            in_specs=[
                pl.BlockSpec((tile_b, D_IN * S_pad), lambda i: (i, 0)),
                full((D_IN, HP)), full((1, HP)),
                full((HP, HP)), full((1, HP)),
                full((HP, HP)), full((1, HP)),
            ],
            out_specs=pl.BlockSpec((tile_b, HP), lambda i: (i, 0)),
        ),
        compiler_params=pltpu.CompilerParams(
            dimension_semantics=("parallel",),
            vmem_limit_bytes=32 * 1024 * 1024),
        cost_estimate=pl.CostEstimate(
            flops=flops, transcendentals=0, bytes_accessed=bytes_accessed),
    )(xf, w1p, b1p, w2p, b2p, w3p, b3p)

    if slice_output:
        # Drop batch padding and padded lanes (skip if the consumer can take
        # the zero-lane-padded (B_pad, 128) slab directly).
        return out[:B, :H3]
    return out


def init_params(key):
    """Deterministic init mimicking nn.Linear default (U[-1/sqrt(fan_in), +])."""
    ks = jax.random.split(key, 6)

    def linear(kw, kb, fan_in, fan_out):
        bound = 1.0 / jnp.sqrt(jnp.float32(fan_in))
        w = jax.random.uniform(kw, (fan_in, fan_out), jnp.float32, -bound, bound)
        b = jax.random.uniform(kb, (1, fan_out), jnp.float32, -bound, bound)
        return w, b

    w1, b1 = linear(ks[0], ks[1], D_IN, H1)
    w2, b2 = linear(ks[2], ks[3], H1, H2)
    w3, b3 = linear(ks[4], ks[5], H2, H3)
    return (w1, b1, w2, b2, w3, b3)


def phi_reference(x, params):
    """Pure-JAX f32 reference of the PyTorch forward."""
    w1, b1, w2, b2, w3, b3 = params
    h = jnp.maximum(x @ w1 + b1[0], 0.0)
    h = jnp.maximum(h @ w2 + b2[0], 0.0)
    h = jnp.maximum(h @ w3 + b3[0], 0.0)
    return jnp.sum(h, axis=1)


if __name__ == "__main__":
    key = jax.random.PRNGKey(0)
    k_params, k_x, k_x2 = jax.random.split(key, 3)
    params = init_params(k_params)

    # Primary small test (S a multiple of 8 -> no masking path).
    B, S = 2, 8
    x = jax.random.normal(k_x, (B, S, D_IN), jnp.float32)
    out = jax.block_until_ready(phi_forward(x, params))
    ref = phi_reference(x, params)
    assert out.shape == (B, H3), out.shape
    # bf16 MXU operands with f32 accumulation -> loosen vs the f32 reference.
    assert jnp.allclose(out, ref, atol=3e-2, rtol=3e-2), "mismatch vs reference (S=8)"

    # Ragged-sequence test (exercises S % 8 != 0 padding + masking path).
    B2, S2 = 3, 5
    x2 = jax.random.normal(k_x2, (B2, S2, D_IN), jnp.float32)
    out2 = jax.block_until_ready(phi_forward(x2, params))
    ref2 = phi_reference(x2, params)
    assert out2.shape == (B2, H3), out2.shape
    assert jnp.allclose(out2, ref2, atol=3e-2, rtol=3e-2), "mismatch vs reference (S=5)"

    print("KERNEL_OK")
</pallas_src>

<mosaic_0001>
module attributes {stable_mosaic.version = 11 : i64} {
  func.func @phi_kernel(%arg0: i32, %arg1: memref<8x24xf32, #tpu.memory_space<vmem>>, %arg2: memref<3x128xf32, #tpu.memory_space<vmem>>, %arg3: memref<1x128xf32, #tpu.memory_space<vmem>>, %arg4: memref<128x128xbf16, #tpu.memory_space<vmem>>, %arg5: memref<1x128xf32, #tpu.memory_space<vmem>>, %arg6: memref<128x128xbf16, #tpu.memory_space<vmem>>, %arg7: memref<1x128xf32, #tpu.memory_space<vmem>>, %arg8: memref<8x128xf32, #tpu.memory_space<vmem>>) attributes {dimension_semantics = [#tpu.dimension_semantics<parallel>], iteration_bounds = array<i64: 1>, scalar_prefetch = 0 : i64, scratch_operands = 0 : i64, tpu.core_type = #tpu.core_type<tc>, window_params = [{transform_indices = @transform_0, window_bounds = array<i64: 8, 24>}, {pipeline_mode = #tpu.pipeline_mode<synchronous>, transform_indices = @transform_1, window_bounds = array<i64: 3, 128>}, {pipeline_mode = #tpu.pipeline_mode<synchronous>, transform_indices = @transform_2, window_bounds = array<i64: 1, 128>}, {pipeline_mode = #tpu.pipeline_mode<synchronous>, transform_indices = @transform_3, window_bounds = array<i64: 128, 128>}, {pipeline_mode = #tpu.pipeline_mode<synchronous>, transform_indices = @transform_4, window_bounds = array<i64: 1, 128>}, {pipeline_mode = #tpu.pipeline_mode<synchronous>, transform_indices = @transform_5, window_bounds = array<i64: 128, 128>}, {pipeline_mode = #tpu.pipeline_mode<synchronous>, transform_indices = @transform_6, window_bounds = array<i64: 1, 128>}, {transform_indices = @transform_7, window_bounds = array<i64: 8, 128>}]} {
    %c0 = arith.constant 0 : index
    %c0_0 = arith.constant 0 : index
    %0 = vector.load %arg1[%c0, %c0_0] : memref<8x24xf32, #tpu.memory_space<vmem>>, vector<8x24xf32>
    %c0_1 = arith.constant 0 : index
    %c0_2 = arith.constant 0 : index
    %1 = vector.load %arg2[%c0_1, %c0_2] : memref<3x128xf32, #tpu.memory_space<vmem>>, vector<3x128xf32>
    %2 = vector.extract_strided_slice %0 {offsets = [0, 0], sizes = [8, 8], strides = [1, 1]} : vector<8x24xf32> to vector<8x8xf32>
    %3 = vector.shape_cast %2 : vector<8x8xf32> to vector<8x8x1xf32>
    %4 = vector.extract_strided_slice %1 {offsets = [0, 0], sizes = [1, 128], strides = [1, 1]} : vector<3x128xf32> to vector<1x128xf32>
    %5 = vector.shape_cast %4 : vector<1x128xf32> to vector<128xf32>
    %6 = vector.shape_cast %5 : vector<128xf32> to vector<1x1x128xf32>
    %7 = vector.broadcast %3 : vector<8x8x1xf32> to vector<8x8x128xf32>
    %8 = vector.broadcast %6 : vector<1x1x128xf32> to vector<8x8x128xf32>
    %9 = arith.mulf %7, %8 : vector<8x8x128xf32>
    %10 = vector.extract_strided_slice %0 {offsets = [0, 8], sizes = [8, 8], strides = [1, 1]} : vector<8x24xf32> to vector<8x8xf32>
    %11 = vector.shape_cast %10 : vector<8x8xf32> to vector<8x8x1xf32>
    %12 = vector.extract_strided_slice %1 {offsets = [1, 0], sizes = [1, 128], strides = [1, 1]} : vector<3x128xf32> to vector<1x128xf32>
    %13 = vector.shape_cast %12 : vector<1x128xf32> to vector<128xf32>
    %14 = vector.shape_cast %13 : vector<128xf32> to vector<1x1x128xf32>
    %15 = vector.broadcast %11 : vector<8x8x1xf32> to vector<8x8x128xf32>
    %16 = vector.broadcast %14 : vector<1x1x128xf32> to vector<8x8x128xf32>
    %17 = arith.mulf %15, %16 : vector<8x8x128xf32>
    %18 = arith.addf %9, %17 : vector<8x8x128xf32>
    %19 = vector.extract_strided_slice %0 {offsets = [0, 16], sizes = [8, 8], strides = [1, 1]} : vector<8x24xf32> to vector<8x8xf32>
    %20 = vector.shape_cast %19 : vector<8x8xf32> to vector<8x8x1xf32>
    %21 = vector.extract_strided_slice %1 {offsets = [2, 0], sizes = [1, 128], strides = [1, 1]} : vector<3x128xf32> to vector<1x128xf32>
    %22 = vector.shape_cast %21 : vector<1x128xf32> to vector<128xf32>
    %23 = vector.shape_cast %22 : vector<128xf32> to vector<1x1x128xf32>
    %24 = vector.broadcast %20 : vector<8x8x1xf32> to vector<8x8x128xf32>
    %25 = vector.broadcast %23 : vector<1x1x128xf32> to vector<8x8x128xf32>
    %26 = arith.mulf %24, %25 : vector<8x8x128xf32>
    %27 = arith.addf %18, %26 : vector<8x8x128xf32>
    %c0_3 = arith.constant 0 : index
    %c0_4 = arith.constant 0 : index
    %28 = vector.load %arg3[%c0_3, %c0_4] : memref<1x128xf32, #tpu.memory_space<vmem>>, vector<1x128xf32>
    %29 = vector.shape_cast %28 : vector<1x128xf32> to vector<128xf32>
    %30 = vector.shape_cast %29 : vector<128xf32> to vector<1x1x128xf32>
    %31 = vector.broadcast %30 : vector<1x1x128xf32> to vector<8x8x128xf32>
    %32 = arith.addf %27, %31 : vector<8x8x128xf32>
    %cst = arith.constant 0.000000e+00 : f32
    %33 = vector.broadcast %cst : f32 to vector<8x8x128xf32>
    %34 = arith.maximumf %32, %33 : vector<8x8x128xf32>
    %35 = vector.shape_cast %34 : vector<8x8x128xf32> to vector<64x128xf32>
    %36 = arith.truncf %35 : vector<64x128xf32> to vector<64x128xbf16>
    %c0_5 = arith.constant 0 : index
    %c0_6 = arith.constant 0 : index
    %37 = vector.load %arg4[%c0_5, %c0_6] : memref<128x128xbf16, #tpu.memory_space<vmem>>, vector<128x128xbf16>
    %cst_7 = arith.constant dense<0.000000e+00> : vector<64x128xf32>
    %38 = tpu.matmul %36, %37, %cst_7 {dimension_numbers = #tpu.dot_dimension_numbers<[1], [0], [0], [1], [0, 0, 1, 1], [], []>} : vector<64x128xbf16>, vector<128x128xbf16>, vector<64x128xf32> -> vector<64x128xf32>
    %c0_8 = arith.constant 0 : index
    %c0_9 = arith.constant 0 : index
    %39 = vector.load %arg5[%c0_8, %c0_9] : memref<1x128xf32, #tpu.memory_space<vmem>>, vector<1x128xf32>
    %40 = vector.broadcast %39 : vector<1x128xf32> to vector<64x128xf32>
    %41 = arith.addf %38, %40 : vector<64x128xf32>
    %cst_10 = arith.constant 0.000000e+00 : f32
    %42 = vector.broadcast %cst_10 : f32 to vector<64x128xf32>
    %43 = arith.maximumf %41, %42 : vector<64x128xf32>
    %44 = arith.truncf %43 : vector<64x128xf32> to vector<64x128xbf16>
    %c0_11 = arith.constant 0 : index
    %c0_12 = arith.constant 0 : index
    %45 = vector.load %arg6[%c0_11, %c0_12] : memref<128x128xbf16, #tpu.memory_space<vmem>>, vector<128x128xbf16>
    %cst_13 = arith.constant dense<0.000000e+00> : vector<64x128xf32>
    %46 = tpu.matmul %44, %45, %cst_13 {dimension_numbers = #tpu.dot_dimension_numbers<[1], [0], [0], [1], [0, 0, 1, 1], [], []>} : vector<64x128xbf16>, vector<128x128xbf16>, vector<64x128xf32> -> vector<64x128xf32>
    %c0_14 = arith.constant 0 : index
    %c0_15 = arith.constant 0 : index
    %47 = vector.load %arg7[%c0_14, %c0_15] : memref<1x128xf32, #tpu.memory_space<vmem>>, vector<1x128xf32>
    %48 = vector.broadcast %47 : vector<1x128xf32> to vector<64x128xf32>
    %49 = arith.addf %46, %48 : vector<64x128xf32>
    %cst_16 = arith.constant 0.000000e+00 : f32
    %50 = vector.broadcast %cst_16 : f32 to vector<64x128xf32>
    %51 = arith.maximumf %49, %50 : vector<64x128xf32>
    %52 = vector.shape_cast %51 : vector<64x128xf32> to vector<8x8x128xf32>
    %cst_17 = arith.constant dense<0.000000e+00> : vector<8x128xf32>
    %53 = vector.multi_reduction <add>, %52, %cst_17 [1] : vector<8x8x128xf32> to vector<8x128xf32>
    %c0_18 = arith.constant 0 : index
    %c0_19 = arith.constant 0 : index
    %54 = vector.load %arg8[%c0_18, %c0_19] : memref<8x128xf32, #tpu.memory_space<vmem>>, vector<8x128xf32>
    tpu.vector_store %arg8[%c0_18, %c0_19], %53 {strides = array<i32>} : memref<8x128xf32, #tpu.memory_space<vmem>>, vector<8x128xf32>,
    return
  }
  func.func @transform_0(%arg0: i32) -> (i32, i32) {
    %c0_i32 = arith.constant 0 : i32
    %c0_i32_0 = arith.constant 0 : i32
    return %arg0, %c0_i32 : i32, i32
  }
  func.func @transform_1(%arg0: i32) -> (i32, i32) {
    %c0_i32 = arith.constant 0 : i32
    %c0_i32_0 = arith.constant 0 : i32
    %c0_i32_1 = arith.constant 0 : i32
    return %c0_i32, %c0_i32_0 : i32, i32
  }
  func.func @transform_2(%arg0: i32) -> (i32, i32) {
    %c0_i32 = arith.constant 0 : i32
    %c0_i32_0 = arith.constant 0 : i32
    %c0_i32_1 = arith.constant 0 : i32
    return %c0_i32, %c0_i32_0 : i32, i32
  }
  func.func @transform_3(%arg0: i32) -> (i32, i32) {
    %c0_i32 = arith.constant 0 : i32
    %c0_i32_0 = arith.constant 0 : i32
    %c0_i32_1 = arith.constant 0 : i32
    return %c0_i32, %c0_i32_0 : i32, i32
  }
  func.func @transform_4(%arg0: i32) -> (i32, i32) {
    %c0_i32 = arith.constant 0 : i32
    %c0_i32_0 = arith.constant 0 : i32
    %c0_i32_1 = arith.constant 0 : i32
    return %c0_i32, %c0_i32_0 : i32, i32
  }
  func.func @transform_5(%arg0: i32) -> (i32, i32) {
    %c0_i32 = arith.constant 0 : i32
    %c0_i32_0 = arith.constant 0 : i32
    %c0_i32_1 = arith.constant 0 : i32
    return %c0_i32, %c0_i32_0 : i32, i32
  }
  func.func @transform_6(%arg0: i32) -> (i32, i32) {
    %c0_i32 = arith.constant 0 : i32
    %c0_i32_0 = arith.constant 0 : i32
    %c0_i32_1 = arith.constant 0 : i32
    return %c0_i32, %c0_i32_0 : i32, i32
  }
  func.func @transform_7(%arg0: i32) -> (i32, i32) {
    %c0_i32 = arith.constant 0 : i32
    %c0_i32_0 = arith.constant 0 : i32
    return %arg0, %c0_i32 : i32, i32
  }
}

</mosaic_0001>

<llo_original>
// kernel: tpu_custom_call.1
$region0: #{tpu_custom_call.1}
  #allocation0 [shape = 'u32[]', space=smem, size = 0x4, offset = 0x4, fixed_abs, tag = 'smem constant byte address 0x4 - core index']
  #allocation1 [shape = 'u32[144,128]{1,0:T(1,128)}', space=vmem, size = 0x12000, scoped, tag = 'internal scratch']
  %s0 = inlined_call_operand.hbm [shape: f32[8,24], index: 0, kind: input, shape index: {}]
  %s1 = inlined_call_operand.hbm [shape: f32[3,128], index: 1, kind: input, shape index: {}]
  %s2 = inlined_call_operand.vmem [shape: f32[1,128], index: 2, kind: input, shape index: {}]
  %s3 = inlined_call_operand.hbm [shape: bf16[128,128], index: 3, kind: input, shape index: {}]
  %s4 = inlined_call_operand.vmem [shape: f32[1,128], index: 4, kind: input, shape index: {}]
  %s5 = inlined_call_operand.hbm [shape: bf16[128,128], index: 5, kind: input, shape index: {}]
  %s6 = inlined_call_operand.vmem [shape: f32[1,128], index: 6, kind: input, shape index: {}]
  %s7 = inlined_call_operand.hbm [shape: f32[8,128], index: 7, kind: output, shape index: {}]
  %s8 = sld [smem:[#allocation0]]
  $region54: #{tpu_custom_call.1} parent=0
    _
  %s10 = ssub.s32 1, %s8
  %s11 = scalar_select 0, %s10, %s8
  $region1: #{tpu_custom_call.1} parent=0
    #allocation2 [shape = 'u8[4096]{0}', space=vmem, size = 0x1000, scoped, tag = 'input window, operand 0, single buffered']
    #allocation3 [shape = 's32[1]{0}', space=sflag, size = 0x4, scoped, tag = 'scoped memory for tpu_custom_call.1']
    #allocation4 [shape = 's32[1]{0}', space=sflag, size = 0x4, scoped, tag = 'scoped memory for tpu_custom_call.1']
    #allocation5 [shape = 'u8[2048]{0}', space=vmem, size = 0x800, scoped, tag = 'input window, operand 1, single buffered']
    #allocation6 [shape = 's32[1]{0}', space=sflag, size = 0x4, scoped, tag = 'scoped memory for tpu_custom_call.1']
    #allocation7 [shape = 'u8[32768]{0}', space=vmem, size = 0x8000, scoped, tag = 'input window, operand 3, single buffered']
    #allocation8 [shape = 'u8[32768]{0}', space=vmem, size = 0x8000, scoped, tag = 'input window, operand 5, single buffered']
    #allocation9 [shape = 's32[1]{0}', space=sflag, size = 0x4, scoped, tag = 'scoped memory for tpu_custom_call.1']
    #allocation10 [shape = 'u8[4096]{0}', space=vmem, size = 0x1000, scoped, tag = 'output window, operand 0, single buffered']
    %12 = vsyncpa [#allocation3], 0
    %13 = vsyncpa [#allocation6], 0
    %14 = vsyncpa [#allocation9], 0
    %15 = vsyncpa [#allocation4], 0
    // Predicated region
    $region2: #{tpu_custom_call.1} parent=1 // pred_check
      _
    $region3: #{tpu_custom_call.1} parent=1 // pred_check_branch
      %17 = sbr.rel (0) target = $region5
    $region4: #{tpu_custom_call.1} parent=1 // pred_region
      %s19 = ssub.s32 128, 128
      %20 = vsyncadd [#allocation3], %s19
      %s22 = sshll.u32 [#allocation2], 4
      %s23 = int_to_ptr.vmem [resolvable:$true] %s22
      %25 = dma.hbm_to_vmem [thread:$0]  %s0, 128, %s23, [#allocation3]
    $region5: #{tpu_custom_call.1} parent=1 // pred_fallthru
      _
    // Predicated region
    $region6: #{tpu_custom_call.1} parent=1 // pred_check
      _
    $region7: #{tpu_custom_call.1} parent=1 // pred_check_branch
      %27 = sbr.rel (0) target = $region9
    $region8: #{tpu_custom_call.1} parent=1 // pred_region
      %s29 = ssub.s32 64, 64
      %30 = vsyncadd [#allocation6], %s29
      %s32 = sshll.u32 [#allocation5], 4
      %s33 = int_to_ptr.vmem [resolvable:$true] %s32
      %35 = dma.hbm_to_vmem [thread:$0]  %s1, 64, %s33, [#allocation6]
    $region9: #{tpu_custom_call.1} parent=1 // pred_fallthru
      _
    // Predicated region
    $region10: #{tpu_custom_call.1} parent=1 // pred_check
      _
    $region11: #{tpu_custom_call.1} parent=1 // pred_check_branch
      %37 = sbr.rel (0) target = $region13
    $region12: #{tpu_custom_call.1} parent=1 // pred_region
      _
    $region13: #{tpu_custom_call.1} parent=1 // pred_fallthru
      _
    // Predicated region
    $region14: #{tpu_custom_call.1} parent=1 // pred_check
      _
    $region15: #{tpu_custom_call.1} parent=1 // pred_check_branch
      %39 = sbr.rel (0) target = $region17
    $region16: #{tpu_custom_call.1} parent=1 // pred_region
      %s41 = ssub.s32 1024, 1024
      %42 = vsyncadd [#allocation6], %s41
      %s43 = sshll.u32 [#allocation7], 4
      %s44 = int_to_ptr.vmem [resolvable:$true] %s43
      %49 = dma.hbm_to_vmem [thread:$0]  %s3, 1024, %s44, [#allocation6], 64, 64, 4
    $region17: #{tpu_custom_call.1} parent=1 // pred_fallthru
      _
    // Predicated region
    $region18: #{tpu_custom_call.1} parent=1 // pred_check
      _
    $region19: #{tpu_custom_call.1} parent=1 // pred_check_branch
      %51 = sbr.rel (0) target = $region21
    $region20: #{tpu_custom_call.1} parent=1 // pred_region
      _
    $region21: #{tpu_custom_call.1} parent=1 // pred_fallthru
      _
    // Predicated region
    $region22: #{tpu_custom_call.1} parent=1 // pred_check
      _
    $region23: #{tpu_custom_call.1} parent=1 // pred_check_branch
      %53 = sbr.rel (0) target = $region25
    $region24: #{tpu_custom_call.1} parent=1 // pred_region
      %s55 = ssub.s32 1024, 1024
      %56 = vsyncadd [#allocation9], %s55
      %s57 = sshll.u32 [#allocation8], 4
      %s58 = int_to_ptr.vmem [resolvable:$true] %s57
      %63 = dma.hbm_to_vmem [thread:$0]  %s5, 1024, %s58, [#allocation9], 64, 64, 4
    $region25: #{tpu_custom_call.1} parent=1 // pred_fallthru
      _
    // Predicated region
    $region26: #{tpu_custom_call.1} parent=1 // pred_check
      _
    $region27: #{tpu_custom_call.1} parent=1 // pred_check_branch
      %65 = sbr.rel (0) target = $region29
    $region28: #{tpu_custom_call.1} parent=1 // pred_region
      _
    $region29: #{tpu_custom_call.1} parent=1 // pred_fallthru
      _
    // Predicated region
    $region30: #{tpu_custom_call.1} parent=1 // pred_check
      _
    $region31: #{tpu_custom_call.1} parent=1 // pred_check_branch
      %67 = sbr.rel (0) target = $region33
    $region32: #{tpu_custom_call.1} parent=1 // pred_region
      %68 = dma.done [#allocation3], 128
    $region33: #{tpu_custom_call.1} parent=1 // pred_fallthru
      _
    // Predicated region
    $region34: #{tpu_custom_call.1} parent=1 // pred_check
      _
    $region35: #{tpu_custom_call.1} parent=1 // pred_check_branch
      %70 = sbr.rel (0) target = $region37
    $region36: #{tpu_custom_call.1} parent=1 // pred_region
      %71 = dma.done [#allocation6], 64
    $region37: #{tpu_custom_call.1} parent=1 // pred_fallthru
      _
    // Predicated region
    $region38: #{tpu_custom_call.1} parent=1 // pred_check
      _
    $region39: #{tpu_custom_call.1} parent=1 // pred_check_branch
      %73 = sbr.rel (0) target = $region41
    $region40: #{tpu_custom_call.1} parent=1 // pred_region
      %74 = dma.done [#allocation6], 1024
    $region41: #{tpu_custom_call.1} parent=1 // pred_fallthru
      _
    // Predicated region
    $region42: #{tpu_custom_call.1} parent=1 // pred_check
      _
    $region43: #{tpu_custom_call.1} parent=1 // pred_check_branch
      %76 = sbr.rel (0) target = $region45
    $region44: #{tpu_custom_call.1} parent=1 // pred_region
      %77 = dma.done [#allocation9], 1024
    $region45: #{tpu_custom_call.1} parent=1 // pred_fallthru
      _
    %v79 = vld [vmem:[#allocation2] sm:$0xff]
    %v80 = vld [vmem:[#allocation5] sm:$0x7]
    %v81 = vlaneseq
    %v82 = vshrl.u32 %v81, 7
    %v83 = vsub.s32 0, %v82
    %v84 = vrot.slane %v79, %v83
    %86 = vbcast.lane.b32.xlu0 %v84, 256
    %v87 = vpop.permute.xlu0 %86
    %v88 = vlaneseq
    %v89 = vshrl.u32 %v88, 7
    %v90 = vsub.s32 1, %v89
    %v91 = vrot.slane %v79, %v90
    %93 = vbcast.lane.b32.xlu0 %v91, 256
    %v94 = vpop.permute.xlu0 %93
    %v95 = vlaneseq
    %v96 = vshrl.u32 %v95, 7
    %v97 = vsub.s32 2, %v96
    %v98 = vrot.slane %v79, %v97
    %100 = vbcast.lane.b32.xlu0 %v98, 256
    %v101 = vpop.permute.xlu0 %100
    %v102 = vlaneseq
    %v103 = vshrl.u32 %v102, 7
    %v104 = vsub.s32 3, %v103
    %v105 = vrot.slane %v79, %v104
    %107 = vbcast.lane.b32.xlu0 %v105, 256
    %v108 = vpop.permute.xlu0 %107
    %v109 = vlaneseq
    %v110 = vshrl.u32 %v109, 7
    %v111 = vsub.s32 4, %v110
    %v112 = vrot.slane %v79, %v111
    %114 = vbcast.lane.b32.xlu0 %v112, 256
    %v115 = vpop.permute.xlu0 %114
    %v116 = vlaneseq
    %v117 = vshrl.u32 %v116, 7
    %v118 = vsub.s32 5, %v117
    %v119 = vrot.slane %v79, %v118
    %121 = vbcast.lane.b32.xlu0 %v119, 256
    %v122 = vpop.permute.xlu0 %121
    %v123 = vlaneseq
    %v124 = vshrl.u32 %v123, 7
    %v125 = vsub.s32 6, %v124
    %v126 = vrot.slane %v79, %v125
    %128 = vbcast.lane.b32.xlu0 %v126, 256
    %v129 = vpop.permute.xlu0 %128
    %v130 = vlaneseq
    %v131 = vshrl.u32 %v130, 7
    %v132 = vsub.s32 7, %v131
    %v133 = vrot.slane %v79, %v132
    %135 = vbcast.lane.b32.xlu0 %v133, 256
    %v136 = vpop.permute.xlu0 %135
    %v137 = vlaneseq
    %v138 = vshrl.u32 %v137, 7
    %v139 = vsub.s32 0, %v138
    %v140 = vrot.slane %v80, %v139
    %v141 = vmul.f32 %v87, %v140
    %v142 = vmul.f32 %v94, %v140
    %v143 = vmul.f32 %v101, %v140
    %v144 = vmul.f32 %v108, %v140
    %v145 = vmul.f32 %v115, %v140
    %v146 = vmul.f32 %v122, %v140
    %v147 = vmul.f32 %v129, %v140
    %v148 = vmul.f32 %v136, %v140
    %s150 = sor.u32 256, 8
    %151 = vbcast.lane.b32.xlu0 %v84, %s150
    %v152 = vpop.permute.xlu0 %151
    %s154 = sor.u32 256, 8
    %155 = vbcast.lane.b32.xlu0 %v91, %s154
    %v156 = vpop.permute.xlu0 %155
    %s158 = sor.u32 256, 8
    %159 = vbcast.lane.b32.xlu0 %v98, %s158
    %v160 = vpop.permute.xlu0 %159
    %s162 = sor.u32 256, 8
    %163 = vbcast.lane.b32.xlu0 %v105, %s162
    %v164 = vpop.permute.xlu0 %163
    %s166 = sor.u32 256, 8
    %167 = vbcast.lane.b32.xlu0 %v112, %s166
    %v168 = vpop.permute.xlu0 %167
    %s170 = sor.u32 256, 8
    %171 = vbcast.lane.b32.xlu0 %v119, %s170
    %v172 = vpop.permute.xlu0 %171
    %s174 = sor.u32 256, 8
    %175 = vbcast.lane.b32.xlu0 %v126, %s174
    %v176 = vpop.permute.xlu0 %175
    %s178 = sor.u32 256, 8
    %179 = vbcast.lane.b32.xlu0 %v133, %s178
    %v180 = vpop.permute.xlu0 %179
    %v181 = vlaneseq
    %v182 = vshrl.u32 %v181, 7
    %v183 = vsub.s32 1, %v182
    %v184 = vrot.slane %v80, %v183
    %v185 = vmul.f32 %v152, %v184
    %v186 = vmul.f32 %v156, %v184
    %v187 = vmul.f32 %v160, %v184
    %v188 = vmul.f32 %v164, %v184
    %v189 = vmul.f32 %v168, %v184
    %v190 = vmul.f32 %v172, %v184
    %v191 = vmul.f32 %v176, %v184
    %v192 = vmul.f32 %v180, %v184
    %v193 = vadd.f32 %v141, %v185
    %v194 = vadd.f32 %v142, %v186
    %v195 = vadd.f32 %v143, %v187
    %v196 = vadd.f32 %v144, %v188
    %v197 = vadd.f32 %v145, %v189
    %v198 = vadd.f32 %v146, %v190
    %v199 = vadd.f32 %v147, %v191
    %v200 = vadd.f32 %v148, %v192
    %s202 = sor.u32 256, 16
    %203 = vbcast.lane.b32.xlu0 %v84, %s202
    %v204 = vpop.permute.xlu0 %203
    %s206 = sor.u32 256, 16
    %207 = vbcast.lane.b32.xlu0 %v91, %s206
    %v208 = vpop.permute.xlu0 %207
    %s210 = sor.u32 256, 16
    %211 = vbcast.lane.b32.xlu0 %v98, %s210
    %v212 = vpop.permute.xlu0 %211
    %s214 = sor.u32 256, 16
    %215 = vbcast.lane.b32.xlu0 %v105, %s214
    %v216 = vpop.permute.xlu0 %215
    %s218 = sor.u32 256, 16
    %219 = vbcast.lane.b32.xlu0 %v112, %s218
    %v220 = vpop.permute.xlu0 %219
    %s222 = sor.u32 256, 16
    %223 = vbcast.lane.b32.xlu0 %v119, %s222
    %v224 = vpop.permute.xlu0 %223
    %s226 = sor.u32 256, 16
    %227 = vbcast.lane.b32.xlu0 %v126, %s226
    %v228 = vpop.permute.xlu0 %227
    %s230 = sor.u32 256, 16
    %231 = vbcast.lane.b32.xlu0 %v133, %s230
    %v232 = vpop.permute.xlu0 %231
    %v233 = vlaneseq
    %v234 = vshrl.u32 %v233, 7
    %v235 = vsub.s32 2, %v234
    %v236 = vrot.slane %v80, %v235
    %v237 = vmul.f32 %v204, %v236
    %v238 = vmul.f32 %v208, %v236
    %v239 = vmul.f32 %v212, %v236
    %v240 = vmul.f32 %v216, %v236
    %v241 = vmul.f32 %v220, %v236
    %v242 = vmul.f32 %v224, %v236
    %v243 = vmul.f32 %v228, %v236
    %v244 = vmul.f32 %v232, %v236
    %v245 = vadd.f32 %v193, %v237
    %v246 = vadd.f32 %v194, %v238
    %v247 = vadd.f32 %v195, %v239
    %v248 = vadd.f32 %v196, %v240
    %v249 = vadd.f32 %v197, %v241
    %v250 = vadd.f32 %v198, %v242
    %v251 = vadd.f32 %v199, %v243
    %v252 = vadd.f32 %v200, %v244
    %v253 = vld [vmem:[%s2] sm:$0x1]
    %v255 = vlaneseq
    %v256 = vshrl.u32 %v255, 7
    %v257 = vsub.s32 0, %v256
    %v258 = vrot.slane %v253, %v257
    %v260 = vadd.f32 %v245, %v258
    %v261 = vadd.f32 %v246, %v258
    %v262 = vadd.f32 %v247, %v258
    %v263 = vadd.f32 %v248, %v258
    %v264 = vadd.f32 %v249, %v258
    %v265 = vadd.f32 %v250, %v258
    %v266 = vadd.f32 %v251, %v258
    %v267 = vadd.f32 %v252, %v258
    %v268 = vmax.f32 %v260, 0.0
    %v269 = vmax.f32 %v261, 0.0
    %v270 = vmax.f32 %v262, 0.0
    %v271 = vmax.f32 %v263, 0.0
    %v272 = vmax.f32 %v264, 0.0
    %v273 = vmax.f32 %v265, 0.0
    %v274 = vmax.f32 %v266, 0.0
    %v275 = vmax.f32 %v267, 0.0
    %v276 = vpack.c.bf16 %v269, %v268
    %v277 = vpack.c.bf16 %v271, %v270
    %v278 = vpack.c.bf16 %v273, %v272
    %v279 = vpack.c.bf16 %v275, %v274
    %v280 = vld [vmem:[#allocation7] sm:$0xf]
    %v281 = vld [vmem:[#allocation7 + $0x4] sm:$0xf]
    %v282 = vld [vmem:[#allocation7 + $0x8] sm:$0xf]
    %v283 = vld [vmem:[#allocation7 + $0xc] sm:$0xf]
    %v284 = vld [vmem:[#allocation7 + $0x10] sm:$0xf]
    %v285 = vld [vmem:[#allocation7 + $0x14] sm:$0xf]
    %v286 = vld [vmem:[#allocation7 + $0x18] sm:$0xf]
    %v287 = vld [vmem:[#allocation7 + $0x1c] sm:$0xf]
    %v288 = vld [vmem:[#allocation7 + $0x20] sm:$0xf]
    %v289 = vld [vmem:[#allocation7 + $0x24] sm:$0xf]
    %v290 = vld [vmem:[#allocation7 + $0x28] sm:$0xf]
    %v291 = vld [vmem:[#allocation7 + $0x2c] sm:$0xf]
    %v292 = vld [vmem:[#allocation7 + $0x30] sm:$0xf]
    %v293 = vld [vmem:[#allocation7 + $0x34] sm:$0xf]
    %v294 = vld [vmem:[#allocation7 + $0x38] sm:$0xf]
    %v295 = vld [vmem:[#allocation7 + $0x3c] sm:$0xf]
    %v296 = vld [vmem:[%s4] sm:$0x1]
    %v298 = vlaneseq
    %v299 = vshrl.u32 %v298, 7
    %v300 = vsub.s32 0, %v299
    %v301 = vrot.slane %v296, %v300
    %v319 = vunpack.c.l.b16 %v280
    %v320 = vunpack.c.l.b16 %v281
    %v321 = vunpack.c.l.b16 %v282
    %v322 = vunpack.c.l.b16 %v283
    %v323 = vunpack.c.l.b16 %v284
    %v324 = vunpack.c.l.b16 %v285
    %v325 = vunpack.c.l.b16 %v286
    %v326 = vunpack.c.l.b16 %v287
    %v327 = vunpack.c.l.b16 %v288
    %v328 = vunpack.c.l.b16 %v289
    %v329 = vunpack.c.l.b16 %v290
    %v330 = vunpack.c.l.b16 %v291
    %v331 = vunpack.c.l.b16 %v292
    %v332 = vunpack.c.l.b16 %v293
    %v333 = vunpack.c.l.b16 %v294
    %v334 = vunpack.c.l.b16 %v295
    %v335 = vpack.c.b16 %v320, %v319
    %v336 = vpack.c.b16 %v322, %v321
    %v337 = vpack.c.b16 %v324, %v323
    %v338 = vpack.c.b16 %v326, %v325
    %v339 = vpack.c.b16 %v328, %v327
    %v340 = vpack.c.b16 %v330, %v329
    %v341 = vpack.c.b16 %v332, %v331
    %v342 = vpack.c.b16 %v334, %v333
    %351 = vmatprep.subr.bf16.mxu0 0
    %352 = vmatpush1.bf16.msra.mxu0 %v335
    %353 = vmatprep.subr.bf16.mxu0 0
    %354 = vmatpush1.bf16.msra.mxu0 %v336
    %355 = vmatprep.subr.bf16.mxu0 0
    %356 = vmatpush1.bf16.msra.mxu0 %v337
    %357 = vmatprep.subr.bf16.mxu0 0
    %358 = vmatpush1.bf16.msra.mxu0 %v338
    %359 = vmatprep.subr.bf16.mxu0 0
    %360 = vmatpush1.bf16.msra.mxu0 %v339
    %361 = vmatprep.subr.bf16.mxu0 0
    %362 = vmatpush1.bf16.msra.mxu0 %v340
    %363 = vmatprep.subr.bf16.mxu0 0
    %364 = vmatpush1.bf16.msra.mxu0 %v341
    %365 = vmatprep.subr.bf16.mxu0 0
    %366 = vmatpush1.bf16.msra.mxu0 %v342
    %367 = vmatprep.subr.bf16.mxu0 0
    %368 = vmatpush1.bf16.msra.mxu0 0
    %369 = vmatprep.subr.bf16.mxu0 0
    %370 = vmatpush1.bf16.msra.mxu0 0
    %371 = vmatprep.subr.bf16.mxu0 0
    %372 = vmatpush1.bf16.msra.mxu0 0
    %373 = vmatprep.subr.bf16.mxu0 0
    %374 = vmatpush1.bf16.msra.mxu0 0
    %375 = vmatprep.subr.bf16.mxu0 0
    %376 = vmatpush1.bf16.msra.mxu0 0
    %377 = vmatprep.subr.bf16.mxu0 0
    %378 = vmatpush1.bf16.msra.mxu0 0
    %379 = vmatprep.subr.bf16.mxu0 0
    %380 = vmatpush1.bf16.msra.mxu0 0
    %381 = vmatprep.subr.bf16.mxu0 0
    %382 = vmatpush1.bf16.msra.mxu0 0
    %383 = vmatprep.mubr.bf16.mxu0 0
    %384 = vmatmul.mubr.bf16.gmra.mrb[0].mxu0 %v276
    %v385 = vpop.f32.mrb[0].mxu0
    %v386 = vadd.f32 %v301, %v385
    %v387 = vpop.f32.mrb[0].mxu0
    %v388 = vpop.f32.mrb[0].mxu0
    %v389 = vadd.f32 %v301, %v388
    %v390 = vpop.f32.mrb[0].mxu0
    %391 = vmatprep.mubr.bf16.mxu0 0
    %392 = vmatmul.mubr.bf16.gmra.mrb[0].mxu0 %v277
    %v393 = vpop.f32.mrb[0].mxu0
    %v394 = vadd.f32 %v301, %v393
    %v395 = vpop.f32.mrb[0].mxu0
    %v396 = vpop.f32.mrb[0].mxu0
    %v397 = vadd.f32 %v301, %v396
    %v398 = vpop.f32.mrb[0].mxu0
    %399 = vmatprep.mubr.bf16.mxu0 0
    %400 = vmatmul.mubr.bf16.gmra.mrb[0].mxu0 %v278
    %v401 = vpop.f32.mrb[0].mxu0
    %v402 = vadd.f32 %v301, %v401
    %v403 = vpop.f32.mrb[0].mxu0
    %v404 = vpop.f32.mrb[0].mxu0
    %v405 = vadd.f32 %v301, %v404
    %v406 = vpop.f32.mrb[0].mxu0
    %407 = vmatprep.mubr.bf16.mxu0 0
    %408 = vmatmul.mubr.bf16.gmra.mrb[0].mxu0 %v279
    %v409 = vpop.f32.mrb[0].mxu0
    %v410 = vadd.f32 %v301, %v409
    %v411 = vpop.f32.mrb[0].mxu0
    %v412 = vpop.f32.mrb[0].mxu0
    %v413 = vadd.f32 %v301, %v412
    %v414 = vpop.f32.mrb[0].mxu0
    %415 = vdwg.mxu0
    %v416 = vmax.f32 %v386, 0.0
    %v417 = vmax.f32 %v389, 0.0
    %v418 = vmax.f32 %v394, 0.0
    %v419 = vmax.f32 %v397, 0.0
    %v420 = vmax.f32 %v402, 0.0
    %v421 = vmax.f32 %v405, 0.0
    %v422 = vmax.f32 %v410, 0.0
    %v423 = vmax.f32 %v413, 0.0
    %v424 = vpack.c.bf16 %v417, %v416
    %v425 = vpack.c.bf16 %v419, %v418
    %v426 = vpack.c.bf16 %v421, %v420
    %v427 = vpack.c.bf16 %v423, %v422
    %v428 = vld [vmem:[#allocation8] sm:$0xf]
    %v429 = vld [vmem:[#allocation8 + $0x4] sm:$0xf]
    %v430 = vld [vmem:[#allocation8 + $0x8] sm:$0xf]
    %v431 = vld [vmem:[#allocation8 + $0xc] sm:$0xf]
    %v432 = vld [vmem:[#allocation8 + $0x10] sm:$0xf]
    %v433 = vld [vmem:[#allocation8 + $0x14] sm:$0xf]
    %v434 = vld [vmem:[#allocation8 + $0x18] sm:$0xf]
    %v435 = vld [vmem:[#allocation8 + $0x1c] sm:$0xf]
    %v436 = vld [vmem:[#allocation8 + $0x20] sm:$0xf]
    %v437 = vld [vmem:[#allocation8 + $0x24] sm:$0xf]
    %v438 = vld [vmem:[#allocation8 + $0x28] sm:$0xf]
    %v439 = vld [vmem:[#allocation8 + $0x2c] sm:$0xf]
    %v440 = vld [vmem:[#allocation8 + $0x30] sm:$0xf]
    %v441 = vld [vmem:[#allocation8 + $0x34] sm:$0xf]
    %v442 = vld [vmem:[#allocation8 + $0x38] sm:$0xf]
    %v443 = vld [vmem:[#allocation8 + $0x3c] sm:$0xf]
    %v444 = vld [vmem:[%s6] sm:$0x1]
    %v446 = vlaneseq
    %v447 = vshrl.u32 %v446, 7
    %v448 = vsub.s32 0, %v447
    %v449 = vrot.slane %v444, %v448
    %v467 = vunpack.c.l.b16 %v428
    %v468 = vunpack.c.l.b16 %v429
    %v469 = vunpack.c.l.b16 %v430
    %v470 = vunpack.c.l.b16 %v431
    %v471 = vunpack.c.l.b16 %v432
    %v472 = vunpack.c.l.b16 %v433
    %v473 = vunpack.c.l.b16 %v434
    %v474 = vunpack.c.l.b16 %v435
    %v475 = vunpack.c.l.b16 %v436
    %v476 = vunpack.c.l.b16 %v437
    %v477 = vunpack.c.l.b16 %v438
    %v478 = vunpack.c.l.b16 %v439
    %v479 = vunpack.c.l.b16 %v440
    %v480 = vunpack.c.l.b16 %v441
    %v481 = vunpack.c.l.b16 %v442
    %v482 = vunpack.c.l.b16 %v443
    %v483 = vpack.c.b16 %v468, %v467
    %v484 = vpack.c.b16 %v470, %v469
    %v485 = vpack.c.b16 %v472, %v471
    %v486 = vpack.c.b16 %v474, %v473
    %v487 = vpack.c.b16 %v476, %v475
    %v488 = vpack.c.b16 %v478, %v477
    %v489 = vpack.c.b16 %v480, %v479
    %v490 = vpack.c.b16 %v482, %v481
    %499 = vmatprep.subr.bf16.mxu0 0
    %500 = vmatpush1.bf16.msra.mxu0 %v483
    %501 = vmatprep.subr.bf16.mxu0 0
    %502 = vmatpush1.bf16.msra.mxu0 %v484
    %503 = vmatprep.subr.bf16.mxu0 0
    %504 = vmatpush1.bf16.msra.mxu0 %v485
    %505 = vmatprep.subr.bf16.mxu0 0
    %506 = vmatpush1.bf16.msra.mxu0 %v486
    %507 = vmatprep.subr.bf16.mxu0 0
    %508 = vmatpush1.bf16.msra.mxu0 %v487
    %509 = vmatprep.subr.bf16.mxu0 0
    %510 = vmatpush1.bf16.msra.mxu0 %v488
    %511 = vmatprep.subr.bf16.mxu0 0
    %512 = vmatpush1.bf16.msra.mxu0 %v489
    %513 = vmatprep.subr.bf16.mxu0 0
    %514 = vmatpush1.bf16.msra.mxu0 %v490
    %515 = vmatprep.subr.bf16.mxu0 0
    %516 = vmatpush1.bf16.msra.mxu0 0
    %517 = vmatprep.subr.bf16.mxu0 0
    %518 = vmatpush1.bf16.msra.mxu0 0
    %519 = vmatprep.subr.bf16.mxu0 0
    %520 = vmatpush1.bf16.msra.mxu0 0
    %521 = vmatprep.subr.bf16.mxu0 0
    %522 = vmatpush1.bf16.msra.mxu0 0
    %523 = vmatprep.subr.bf16.mxu0 0
    %524 = vmatpush1.bf16.msra.mxu0 0
    %525 = vmatprep.subr.bf16.mxu0 0
    %526 = vmatpush1.bf16.msra.mxu0 0
    %527 = vmatprep.subr.bf16.mxu0 0
    %528 = vmatpush1.bf16.msra.mxu0 0
    %529 = vmatprep.subr.bf16.mxu0 0
    %530 = vmatpush1.bf16.msra.mxu0 0
    %531 = vmatprep.mubr.bf16.mxu0 0
    %532 = vmatmul.mubr.bf16.gmra.mrb[0].mxu0 %v424
    %v533 = vpop.f32.mrb[0].mxu0
    %v534 = vadd.f32 %v449, %v533
    %v535 = vpop.f32.mrb[0].mxu0
    %v536 = vpop.f32.mrb[0].mxu0
    %v537 = vadd.f32 %v449, %v536
    %v538 = vpop.f32.mrb[0].mxu0
    %539 = vmatprep.mubr.bf16.mxu0 0
    %540 = vmatmul.mubr.bf16.gmra.mrb[0].mxu0 %v425
    %v541 = vpop.f32.mrb[0].mxu0
    %v542 = vadd.f32 %v449, %v541
    %v543 = vpop.f32.mrb[0].mxu0
    %v544 = vpop.f32.mrb[0].mxu0
    %v545 = vadd.f32 %v449, %v544
    %v546 = vpop.f32.mrb[0].mxu0
    %547 = vmatprep.mubr.bf16.mxu0 0
    %548 = vmatmul.mubr.bf16.gmra.mrb[0].mxu0 %v426
    %v549 = vpop.f32.mrb[0].mxu0
    %v550 = vadd.f32 %v449, %v549
    %v551 = vpop.f32.mrb[0].mxu0
    %v552 = vpop.f32.mrb[0].mxu0
    %v553 = vadd.f32 %v449, %v552
    %v554 = vpop.f32.mrb[0].mxu0
    %555 = vmatprep.mubr.bf16.mxu0 0
    %556 = vmatmul.mubr.bf16.gmra.mrb[0].mxu0 %v427
    %v557 = vpop.f32.mrb[0].mxu0
    %v558 = vadd.f32 %v449, %v557
    %v559 = vpop.f32.mrb[0].mxu0
    %v560 = vpop.f32.mrb[0].mxu0
    %v561 = vadd.f32 %v449, %v560
    %v562 = vpop.f32.mrb[0].mxu0
    %563 = vdwg.mxu0
    %v564 = vmax.f32 %v534, 0.0
    %v565 = vmax.f32 %v537, 0.0
    %v566 = vmax.f32 %v542, 0.0
    %v567 = vmax.f32 %v545, 0.0
    %v568 = vmax.f32 %v550, 0.0
    %v569 = vmax.f32 %v553, 0.0
    %v570 = vmax.f32 %v558, 0.0
    %v571 = vmax.f32 %v561, 0.0
    %v572 = vrot.slane %v564, 4
    %v573 = vadd.f32 %v564, %v572
    %v574 = vrot.slane %v573, 2
    %v575 = vadd.f32 %v573, %v574
    %v576 = vrot.slane %v575, 1
    %v577 = vadd.f32 %v575, %v576
    %v578 = vrot.slane %v565, 4
    %v579 = vadd.f32 %v565, %v578
    %v580 = vrot.slane %v579, 2
    %v581 = vadd.f32 %v579, %v580
    %v582 = vrot.slane %v581, 1
    %v583 = vadd.f32 %v581, %v582
    %v584 = vrot.slane %v566, 4
    %v585 = vadd.f32 %v566, %v584
    %v586 = vrot.slane %v585, 2
    %v587 = vadd.f32 %v585, %v586
    %v588 = vrot.slane %v587, 1
    %v589 = vadd.f32 %v587, %v588
    %v590 = vrot.slane %v567, 4
    %v591 = vadd.f32 %v567, %v590
    %v592 = vrot.slane %v591, 2
    %v593 = vadd.f32 %v591, %v592
    %v594 = vrot.slane %v593, 1
    %v595 = vadd.f32 %v593, %v594
    %v596 = vrot.slane %v568, 4
    %v597 = vadd.f32 %v568, %v596
    %v598 = vrot.slane %v597, 2
    %v599 = vadd.f32 %v597, %v598
    %v600 = vrot.slane %v599, 1
    %v601 = vadd.f32 %v599, %v600
    %v602 = vrot.slane %v569, 4
    %v603 = vadd.f32 %v569, %v602
    %v604 = vrot.slane %v603, 2
    %v605 = vadd.f32 %v603, %v604
    %v606 = vrot.slane %v605, 1
    %v607 = vadd.f32 %v605, %v606
    %v608 = vrot.slane %v570, 4
    %v609 = vadd.f32 %v570, %v608
    %v610 = vrot.slane %v609, 2
    %v611 = vadd.f32 %v609, %v610
    %v612 = vrot.slane %v611, 1
    %v613 = vadd.f32 %v611, %v612
    %v614 = vrot.slane %v571, 4
    %v615 = vadd.f32 %v571, %v614
    %v616 = vrot.slane %v615, 2
    %v617 = vadd.f32 %v615, %v616
    %v618 = vrot.slane %v617, 1
    %v619 = vadd.f32 %v617, %v618
    %vm628 = vcmask 1041409
    %v629 = vsel %vm628, %v583, %v577
    %vm630 = vcmask 1042434
    %v631 = vsel %vm630, %v589, %v629
    %vm632 = vcmask 1043459
    %v633 = vsel %vm632, %v595, %v631
    %vm634 = vcmask 1044484
    %v635 = vsel %vm634, %v601, %v633
    %vm636 = vcmask 1045509
    %v637 = vsel %vm636, %v607, %v635
    %vm638 = vcmask 1046534
    %v639 = vsel %vm638, %v613, %v637
    %vm640 = vcmask 1047559
    %v641 = vsel %vm640, %v619, %v639
    %643 = vst [vmem:[#allocation10] sm:$0xff] %v641
    // Predicated region
    $region46: #{tpu_custom_call.1} parent=1 // pred_check
      _
    $region47: #{tpu_custom_call.1} parent=1 // pred_check_branch
      %645 = sbr.rel (0) target = $region49
    $region48: #{tpu_custom_call.1} parent=1 // pred_region
      %s647 = ssub.s32 128, 128
      %648 = vsyncadd [#allocation4], %s647
      %s650 = sshll.u32 [#allocation10], 4
      %s651 = int_to_ptr.vmem [resolvable:$true] %s650
      %653 = dma.vmem_to_hbm [thread:$0]  %s651, 128, %s7, [#allocation4]
    $region49: #{tpu_custom_call.1} parent=1 // pred_fallthru
      _
    // Predicated region
    $region50: #{tpu_custom_call.1} parent=1 // pred_check
      _
    $region51: #{tpu_custom_call.1} parent=1 // pred_check_branch
      %655 = sbr.rel (0) target = $region53
    $region52: #{tpu_custom_call.1} parent=1 // pred_region
      %656 = dma.done [#allocation4], 128
    $region53: #{tpu_custom_call.1} parent=1 // pred_fallthru
      _
    %657 = vsyncpa [#allocation3], 1
    %658 = vsyncpa [#allocation6], 1
    %659 = vsyncpa [#allocation9], 1
    %660 = vsyncpa [#allocation4], 1

</llo_original>
